<compile_context>
chip_gen: v7x
topology: tpu7x:2x2x1
jax: 0.10.0
libtpu: 0.0.40
codegen_flags: <defaults>
</compile_context>

<pallas_src>
import functools

import jax
import jax.numpy as jnp
from jax.experimental import pallas as pl
from jax.experimental.pallas import tpu as pltpu

MU = 0.0       # query_kwargs('mu', 0.0, **kwargs) default
SIGMA = 0.1    # query_kwargs('sigma', 0.1, **kwargs) default
DX = 0.01      # query_kwargs('dx', 0.01, **kwargs) default
MODE = 0       # query_kwargs('mode', 0, **kwargs) default
EPS = 1e-9


def _dog_kernel(x_ref, o_ref, *, mu, sigma, dx, mode):
    # One lane-dense (TR, C) tile per grid step; purely elementwise
    # (2 EUP exps + a handful of VALU ops per element -> far below slot budgets,
    #  the pipeline is DMA-limited).
    x = x_ref[...].astype(jnp.float32)

    inv_s = 1.0 / (EPS + sigma)            # folded to an f32 constant
    a1 = (x + (dx - mu)) * inv_s           # (x + dx - mu) / (eps + sigma)
    a2 = (x - (dx + mu)) * inv_s           # (x - dx - mu) / (eps + sigma)
    g1 = jnp.exp(-0.5 * (a1 * a1))         # EUP transcendental
    g2 = jnp.exp(-0.5 * (a2 * a2))

    if mode:
        res = g1 - g2 * 2.0 - 1.0          # literal PyTorch semantics for mode != 0
    else:
        res = g1 - g2

    o_ref[...] = res.astype(o_ref.dtype)


def _chip_tile_budget():
    """Per-generation (input-tile byte target, vmem_limit_bytes override)."""
    kind = ""
    try:
        kind = jax.devices()[0].device_kind.lower()
    except Exception:
        pass
    if "v7" in kind:
        # 3.2 TB/s HBM: amortize the ~0.35 us per-step overhead with larger
        # tiles.  Working set ~= 4x tile (2 in + 2 out buffers) ~= 24 MiB, so
        # raise the scoped VMEM limit (default 32 MiB, physical 64 MiB per TC).
        return 6 * 1024 * 1024, 48 << 20
    if "v6" in kind:
        # ~4 MiB tiles -> ~16 MiB working set, well inside the 32 MiB default.
        return 4 * 1024 * 1024, None
    # v5e / unknown: keep the double-buffered working set <= ~8 MiB
    # (16 MiB scoped VMEM default); bigger tiles buy little at ~0.8 TB/s.
    return 2 * 1024 * 1024, None


def do_gaussian(x, mu=MU, sigma=SIGMA, dx=DX, mode=MODE, donate_input=False):
    """Pallas equivalent of DoGaussian.forward for an arbitrary-shaped input."""
    orig_shape = x.shape
    orig_dtype = x.dtype
    n = x.size
    itemsize = jnp.dtype(orig_dtype).itemsize

    # Widest lane count in {512, 256, 128} that divides n -> zero-copy reshape.
    # R does not need to be a multiple of 8: the (8,128) rule constrains the
    # block_shape, and Pallas masks the partial last row block.
    if n % 512 == 0:
        C = 512
    elif n % 256 == 0:
        C = 256
    else:
        C = 128
    n_pad = pl.cdiv(n, C) * C

    flat = jnp.ravel(x)                      # contiguous x -> free bitcast
    if n_pad != n:
        # Only for genuinely ragged n (n % 128 != 0).  Typical activation
        # shapes never hit this; the pad/slice pair costs extra HBM passes.
        flat = jnp.pad(flat, (0, n_pad - n))
    slab = flat.reshape(n_pad // C, C)
    R = slab.shape[0]

    # Sublane alignment in the native dtype (packing: f32->8, bf16->16, i8->32).
    align = 8 * max(1, 4 // itemsize)
    tile_bytes, vmem_limit = _chip_tile_budget()
    bytes_per_row = C * itemsize             # native dtype bytes, not hardcoded f32

    if R <= align:
        TR = R                               # full-extent block is always legal
    else:
        TR = min(R, max(align, tile_bytes // bytes_per_row))
        TR = (TR // align) * align
        # Keep >= ~4 grid steps on mid/large inputs so megacore (v7x: 2 TCs)
        # can shard the "parallel" row axis instead of idling one core.
        if R >= 4 * align:
            cap = ((pl.cdiv(R, 4) + align - 1) // align) * align
            TR = min(TR, cap)
        TR = max(TR, align)
    grid = (pl.cdiv(R, TR),)

    kernel = functools.partial(
        _dog_kernel, mu=float(mu), sigma=float(sigma), dx=float(dx),
        mode=int(mode))

    cp_kwargs = dict(dimension_semantics=("parallel",))
    if vmem_limit is not None:
        cp_kwargs["vmem_limit_bytes"] = vmem_limit

    call_kwargs = {}
    if donate_input:
        # Same shape/dtype elementwise op: let the output reuse the input HBM
        # buffer when the caller donates x (XLA copies otherwise, so opt-in).
        call_kwargs["input_output_aliases"] = {0: 0}

    out = pl.pallas_call(
        kernel,
        out_shape=jax.ShapeDtypeStruct((R, C), orig_dtype),
        grid=grid,
        in_specs=[pl.BlockSpec((TR, C), lambda i: (i, 0))],
        out_specs=pl.BlockSpec((TR, C), lambda i: (i, 0)),
        compiler_params=pltpu.CompilerParams(**cp_kwargs),
        **call_kwargs,
    )(slab)

    out = out.reshape(-1)
    if n_pad != n:
        out = out[:n]
    return out.reshape(orig_shape)


def _reference(x, mu=MU, sigma=SIGMA, dx=DX, mode=MODE):
    """Pure-JAX reference mirroring the PyTorch forward."""
    xf = x.astype(jnp.float32)
    g1 = jnp.exp(-((xf + dx - mu) / (EPS + sigma)) ** 2 / 2)
    g2 = jnp.exp(-((xf - dx - mu) / (EPS + sigma)) ** 2 / 2)
    if mode:
        return g1 - g2 * 2 - 1
    return g1 - g2


if __name__ == "__main__":
    key = jax.random.PRNGKey(0)

    # Primary test: NCHW activation, zero-copy path (2048 elements, C=512).
    x = jax.random.normal(key, (2, 4, 16, 16), dtype=jnp.float32)
    out = jax.block_until_ready(do_gaussian(x))
    ref = _reference(x)
    assert out.shape == x.shape and out.dtype == x.dtype
    assert jnp.allclose(out, ref, atol=1e-5, rtol=1e-5), (
        float(jnp.max(jnp.abs(out - ref))))

    # Partial-last-row-block path: n % 128 == 0 but R not a multiple of 8.
    x2 = jax.random.normal(jax.random.PRNGKey(1), (2, 4, 33, 16), jnp.float32)
    out2 = jax.block_until_ready(do_gaussian(x2))
    assert jnp.allclose(out2, _reference(x2), atol=1e-5, rtol=1e-5)

    # bf16 path: native-dtype I/O, f32 in-vreg compute.
    x3 = x.astype(jnp.bfloat16)
    out3 = jax.block_until_ready(do_gaussian(x3))
    assert out3.dtype == jnp.bfloat16
    assert jnp.allclose(out3.astype(jnp.float32), _reference(x3), atol=2e-2)

    print("KERNEL_OK")
</pallas_src>

<mosaic_0001>
module attributes {stable_mosaic.version = 11 : i64} {
  func.func @_dog_kernel(%arg0: i32, %arg1: memref<4x512xf32, #tpu.memory_space<vmem>>, %arg2: memref<4x512xf32, #tpu.memory_space<vmem>>) attributes {dimension_semantics = [#tpu.dimension_semantics<parallel>], iteration_bounds = array<i64: 1>, scalar_prefetch = 0 : i64, scratch_operands = 0 : i64, tpu.core_type = #tpu.core_type<tc>, window_params = [{transform_indices = @transform_0, window_bounds = array<i64: 4, 512>}, {transform_indices = @transform_1, window_bounds = array<i64: 4, 512>}]} {
    %c0 = arith.constant 0 : index
    %c0_0 = arith.constant 0 : index
    %0 = vector.load %arg1[%c0, %c0_0] : memref<4x512xf32, #tpu.memory_space<vmem>>, vector<4x512xf32>
    %cst = arith.constant 0.00999999977 : f32
    %1 = vector.broadcast %cst : f32 to vector<4x512xf32>
    %2 = arith.addf %0, %1 : vector<4x512xf32>
    %cst_1 = arith.constant 1.000000e+01 : f32
    %3 = vector.broadcast %cst_1 : f32 to vector<4x512xf32>
    %4 = arith.mulf %2, %3 : vector<4x512xf32>
    %cst_2 = arith.constant 0.00999999977 : f32
    %5 = vector.broadcast %cst_2 : f32 to vector<4x512xf32>
    %6 = arith.subf %0, %5 : vector<4x512xf32>
    %cst_3 = arith.constant 1.000000e+01 : f32
    %7 = vector.broadcast %cst_3 : f32 to vector<4x512xf32>
    %8 = arith.mulf %6, %7 : vector<4x512xf32>
    %9 = arith.mulf %4, %4 : vector<4x512xf32>
    %cst_4 = arith.constant -5.000000e-01 : f32
    %10 = vector.broadcast %cst_4 : f32 to vector<4x512xf32>
    %11 = arith.mulf %10, %9 : vector<4x512xf32>
    %12 = math.exp %11 : vector<4x512xf32>
    %13 = arith.mulf %8, %8 : vector<4x512xf32>
    %cst_5 = arith.constant -5.000000e-01 : f32
    %14 = vector.broadcast %cst_5 : f32 to vector<4x512xf32>
    %15 = arith.mulf %14, %13 : vector<4x512xf32>
    %16 = math.exp %15 : vector<4x512xf32>
    %17 = arith.subf %12, %16 : vector<4x512xf32>
    %c0_6 = arith.constant 0 : index
    %c0_7 = arith.constant 0 : index
    %18 = vector.load %arg2[%c0_6, %c0_7] : memref<4x512xf32, #tpu.memory_space<vmem>>, vector<4x512xf32>
    tpu.vector_store %arg2[%c0_6, %c0_7], %17 {strides = array<i32>} : memref<4x512xf32, #tpu.memory_space<vmem>>, vector<4x512xf32>,
    return
  }
  func.func @transform_0(%arg0: i32) -> (i32, i32) {
    %c0_i32 = arith.constant 0 : i32
    %c0_i32_0 = arith.constant 0 : i32
    return %arg0, %c0_i32 : i32, i32
  }
  func.func @transform_1(%arg0: i32) -> (i32, i32) {
    %c0_i32 = arith.constant 0 : i32
    %c0_i32_0 = arith.constant 0 : i32
    return %arg0, %c0_i32 : i32, i32
  }
}

</mosaic_0001>

<llo_original>
// kernel: tpu_custom_call.1
$region0: #{tpu_custom_call.1}
  #allocation0 [shape = 'u32[]', space=smem, size = 0x4, offset = 0x4, fixed_abs, tag = 'smem constant byte address 0x4 - core index']
  #allocation1 [shape = 'u32[144,128]{1,0:T(1,128)}', space=vmem, size = 0x12000, scoped, tag = 'internal scratch']
  %s0 = inlined_call_operand.hbm [shape: f32[4,512], index: 0, kind: input, shape index: {}]
  %s1 = inlined_call_operand.hbm [shape: f32[4,512], index: 1, kind: output, shape index: {}]
  %s2 = sld [smem:[#allocation0]]
  $region18: #{tpu_custom_call.1} parent=0
    _
  %s4 = ssub.s32 1, %s2
  %s5 = scalar_select 0, %s4, %s2
  $region1: #{tpu_custom_call.1} parent=0
    #allocation2 [shape = 'u8[8192]{0}', space=vmem, size = 0x2000, scoped, tag = 'input window, operand 0, single buffered']
    #allocation3 [shape = 's32[1]{0}', space=sflag, size = 0x4, scoped, tag = 'scoped memory for tpu_custom_call.1']
    #allocation4 [shape = 's32[1]{0}', space=sflag, size = 0x4, scoped, tag = 'scoped memory for tpu_custom_call.1']
    #allocation5 [shape = 'u8[8192]{0}', space=vmem, size = 0x2000, scoped, tag = 'output window, operand 0, single buffered']
    %6 = vsyncpa [#allocation3], 0
    %7 = vsyncpa [#allocation4], 0
    // Predicated region
    $region2: #{tpu_custom_call.1} parent=1 // pred_check
      _
    $region3: #{tpu_custom_call.1} parent=1 // pred_check_branch
      %9 = sbr.rel (0) target = $region5
    $region4: #{tpu_custom_call.1} parent=1 // pred_region
      %s11 = ssub.s32 256, 256
      %12 = vsyncadd [#allocation3], %s11
      %s14 = sshll.u32 [#allocation2], 4
      %s15 = int_to_ptr.vmem [resolvable:$true] %s14
      %17 = dma.hbm_to_vmem [thread:$0]  %s0, 256, %s15, [#allocation3]
    $region5: #{tpu_custom_call.1} parent=1 // pred_fallthru
      _
    // Predicated region
    $region6: #{tpu_custom_call.1} parent=1 // pred_check
      _
    $region7: #{tpu_custom_call.1} parent=1 // pred_check_branch
      %19 = sbr.rel (0) target = $region9
    $region8: #{tpu_custom_call.1} parent=1 // pred_region
      %20 = dma.done [#allocation3], 256
    $region9: #{tpu_custom_call.1} parent=1 // pred_fallthru
      _
    %v21 = vld [vmem:[#allocation2] sm:$0xff]
    %v22 = vld [vmem:[#allocation2 + $0x8] sm:$0xff]
    %v23 = vadd.f32 %v21, 0.01
    %v24 = vadd.f32 %v22, 0.01
    %v25 = vmul.f32 %v23, 10.0
    %v26 = vmul.f32 %v24, 10.0
    %v27 = vsub.f32 %v21, 0.01
    %v28 = vsub.f32 %v22, 0.01
    %v29 = vmul.f32 %v27, 10.0
    %v30 = vmul.f32 %v28, 10.0
    %v31 = vmul.f32 %v25, %v25
    %v32 = vmul.f32 %v26, %v26
    %v33 = vmul.f32 %v31, -0.5
    %v34 = vmul.f32 %v32, -0.5
    %v35 = vmul.f32 %v33, 1.442695
    %v36 = vpow.pop %v35
    %v37 = vmul.f32 %v34, 1.442695
    %v38 = vpow.pop %v37
    %v39 = vmul.f32 %v29, %v29
    %v40 = vmul.f32 %v30, %v30
    %v41 = vmul.f32 %v39, -0.5
    %v42 = vmul.f32 %v40, -0.5
    %v43 = vmul.f32 %v41, 1.442695
    %v44 = vpow.pop %v43
    %v45 = vmul.f32 %v42, 1.442695
    %v46 = vpow.pop %v45
    %v47 = vsub.f32 %v36, %v44
    %v48 = vsub.f32 %v38, %v46
    %49 = vst [vmem:[#allocation5] sm:$0xff] %v47
    %50 = vst [vmem:[#allocation5 + $0x8] sm:$0xff] %v48
    // Predicated region
    $region10: #{tpu_custom_call.1} parent=1 // pred_check
      _
    $region11: #{tpu_custom_call.1} parent=1 // pred_check_branch
      %52 = sbr.rel (0) target = $region13
    $region12: #{tpu_custom_call.1} parent=1 // pred_region
      %s54 = ssub.s32 256, 256
      %55 = vsyncadd [#allocation4], %s54
      %s57 = sshll.u32 [#allocation5], 4
      %s58 = int_to_ptr.vmem [resolvable:$true] %s57
      %60 = dma.vmem_to_hbm [thread:$0]  %s58, 256, %s1, [#allocation4]
    $region13: #{tpu_custom_call.1} parent=1 // pred_fallthru
      _
    // Predicated region
    $region14: #{tpu_custom_call.1} parent=1 // pred_check
      _
    $region15: #{tpu_custom_call.1} parent=1 // pred_check_branch
      %62 = sbr.rel (0) target = $region17
    $region16: #{tpu_custom_call.1} parent=1 // pred_region
      %63 = dma.done [#allocation4], 256
    $region17: #{tpu_custom_call.1} parent=1 // pred_fallthru
      _
    %64 = vsyncpa [#allocation3], 1
    %65 = vsyncpa [#allocation4], 1

</llo_original>
